<compile_context>
chip_gen: v6e
topology: v6e:2x2x1
jax: 0.10.0
libtpu: 0.0.40
codegen_flags: <defaults>
</compile_context>

<pallas_src>
import functools

import jax
import jax.numpy as jnp
from jax import lax
from jax.experimental import pallas as pl
from jax.experimental.pallas import tpu as pltpu

BN_EPS = 1e-5      # nn.BatchNorm1d default eps
NORM_EPS = 1e-12   # F.normalize default eps


def _round_up(n, m):
    return (n + m - 1) // m * m


def _mlp3_kernel(N0, N3, R1, W, inv_b, x_ref, slab_ref, o_ref):
    """Fused 3-layer MLP forward.

    slab_ref rows:
      [0      : R1   )  w1.T padded to (R1, W)   (real data in [0:N0, 0:N1])
      [R1     : R1+W )  w2.T padded to (W,  W)   (real data in [0:N1, 0:N2])
      [R1+W   : R1+2W)  w3.T padded to (W,  W)   (real data in [0:N2, 0:N3])
      [R1+2W  : +8   )  rows g1, b1, g2, b2, bias3 (each zero-padded to W lanes)
    Zero padding guarantees all lanes >= the real feature count stay exactly 0
    through every layer, so full-width (W-lane) math is numerically identical
    to the un-padded computation.
    """
    x = x_ref[...]                                                  # (B, N0)

    w1 = slab_ref[0:N0, :]                                          # (N0, W)
    w2 = slab_ref[R1:R1 + W, :]                                     # (W, W)
    w3 = slab_ref[R1 + W:R1 + 2 * W, :]                             # (W, W)
    pbase = R1 + 2 * W
    g1 = slab_ref[pbase + 0:pbase + 1, :]                           # (1, W)
    b1 = slab_ref[pbase + 1:pbase + 2, :]
    g2 = slab_ref[pbase + 2:pbase + 3, :]
    b2 = slab_ref[pbase + 3:pbase + 4, :]
    bias3 = slab_ref[pbase + 4:pbase + 5, :]

    # ---- fc1 (no bias) + bn1 (batch stats, one-pass) + relu ----
    h = jnp.dot(x, w1, preferred_element_type=jnp.float32)          # (B, W)
    mu = jnp.sum(h, axis=0, keepdims=True) * inv_b
    ex2 = jnp.sum(h * h, axis=0, keepdims=True) * inv_b
    var = jnp.maximum(ex2 - mu * mu, 0.0)                           # biased var
    scale = g1 * lax.rsqrt(var + BN_EPS)
    shift = b1 - mu * scale
    h = jnp.maximum(h * scale + shift, 0.0)

    # ---- fc2 (no bias) + bn2 (batch stats, one-pass) + relu ----
    h = jnp.dot(h, w2, preferred_element_type=jnp.float32)          # (B, W)
    mu = jnp.sum(h, axis=0, keepdims=True) * inv_b
    ex2 = jnp.sum(h * h, axis=0, keepdims=True) * inv_b
    var = jnp.maximum(ex2 - mu * mu, 0.0)
    scale = g2 * lax.rsqrt(var + BN_EPS)
    shift = b2 - mu * scale
    h = jnp.maximum(h * scale + shift, 0.0)

    # ---- fc3 (with bias) + tanh + L2-normalize along dim=1 ----
    z = jnp.dot(h, w3, preferred_element_type=jnp.float32) + bias3  # (B, W)
    t = jnp.tanh(z)                                  # padded lanes: tanh(0)=0
    ss = jnp.sum(t * t, axis=1, keepdims=True)       # padded lanes add 0
    # t / max(sqrt(ss), eps)  ==  t * rsqrt(max(ss, eps^2))  for ss >= 0
    y = t * lax.rsqrt(jnp.maximum(ss, NORM_EPS * NORM_EPS))
    o_ref[...] = y[:, 0:N3]


def prepare_params(w1, g1, b1, w2, g2, b2, w3, bias3):
    """One-time preprocessing (NOT in the per-call hot path).

    Pre-transposes the PyTorch (out, in) weights to (in, out), pads every
    section to 128 lanes / 8-row multiples, and concatenates everything into a
    single f32 slab so the kernel needs only two input DMAs (x + slab).
    Returns (slab, dims) where dims is a tuple of static ints.
    """
    w1 = jnp.asarray(w1, jnp.float32)   # (N1, N0)
    w2 = jnp.asarray(w2, jnp.float32)   # (N2, N1)
    w3 = jnp.asarray(w3, jnp.float32)   # (N3, N2)
    N1, N0 = w1.shape
    N2 = w2.shape[0]
    N3 = w3.shape[0]
    W = max(_round_up(N1, 128), _round_up(N2, 128), 128)
    R1 = _round_up(N0, 8)

    def pad2(a, rows, cols):
        return jnp.pad(a, ((0, rows - a.shape[0]), (0, cols - a.shape[1])))

    s1 = pad2(w1.T, R1, W)   # (R1, W)
    s2 = pad2(w2.T, W, W)    # (W, W)  zero rows >= N1 match zero-padded h1 lanes
    s3 = pad2(w3.T, W, W)    # (W, W)

    def prow(v):
        v = jnp.asarray(v, jnp.float32).reshape(1, -1)
        return jnp.pad(v, ((0, 0), (0, W - v.shape[1])))

    params = jnp.concatenate(
        [prow(g1), prow(b1), prow(g2), prow(b2), prow(bias3),
         jnp.zeros((3, W), jnp.float32)], axis=0)                    # (8, W)

    slab = jnp.concatenate([s1, s2, s3, params], axis=0)            # (R1+2W+8, W)
    return slab, (N0, N1, N2, N3, R1, W)


@functools.partial(jax.jit, static_argnames=("dims",))
def model_3layer_forward(x, slab, dims):
    """x: (B, N0) f32.  slab/dims from prepare_params."""
    N0, N1, N2, N3, R1, W = dims
    B = x.shape[0]
    kernel = functools.partial(_mlp3_kernel, N0, N3, R1, W, 1.0 / B)
    vmem = pl.BlockSpec(memory_space=pltpu.MemorySpace.VMEM)
    return pl.pallas_call(
        kernel,
        out_shape=jax.ShapeDtypeStruct((B, N3), jnp.float32),
        in_specs=[vmem, vmem],
        out_specs=vmem,
    )(x.astype(jnp.float32), slab)


def reference_forward(x, w1, g1, b1, w2, g2, b2, w3, bias3):
    """Pure-JAX reference matching the PyTorch forward (training-mode BN)."""
    def bn(h, g, b):
        mu = jnp.mean(h, axis=0, keepdims=True)
        var = jnp.mean((h - mu) ** 2, axis=0, keepdims=True)
        return (h - mu) / jnp.sqrt(var + BN_EPS) * g + b

    h = jax.nn.relu(bn(x @ w1.T, g1, b1))
    h = jax.nn.relu(bn(h @ w2.T, g2, b2))
    t = jnp.tanh(h @ w3.T + bias3)
    n = jnp.linalg.norm(t, axis=1, keepdims=True)
    return t / jnp.maximum(n, NORM_EPS)


if __name__ == "__main__":
    # Small shapes implied by the module: x is (batch, N0) -> output (batch, 4)
    B, N0, N1, N2 = 8, 32, 64, 32

    key = jax.random.PRNGKey(0)
    kx, k1, k2, k3, kb3, kg1, kbt1, kg2, kbt2 = jax.random.split(key, 9)

    x = jax.random.normal(kx, (B, N0), dtype=jnp.float32)

    # Synthetic parameters (PyTorch layout: Linear weight is (out, in)).
    w1 = jax.random.normal(k1, (N1, N0), dtype=jnp.float32) * 0.1
    w2 = jax.random.normal(k2, (N2, N1), dtype=jnp.float32) * 0.1
    w3 = jax.random.normal(k3, (4, N2), dtype=jnp.float32) * 0.1
    bias3 = jax.random.normal(kb3, (4,), dtype=jnp.float32) * 0.05
    # Non-trivial BN affine params to exercise the packed-slab path.
    g1 = 1.0 + 0.1 * jax.random.normal(kg1, (N1,), dtype=jnp.float32)
    b1 = 0.1 * jax.random.normal(kbt1, (N1,), dtype=jnp.float32)
    g2 = 1.0 + 0.1 * jax.random.normal(kg2, (N2,), dtype=jnp.float32)
    b2 = 0.1 * jax.random.normal(kbt2, (N2,), dtype=jnp.float32)

    # One-time parameter preprocessing (hoisted out of the per-call hot path).
    slab, dims = prepare_params(w1, g1, b1, w2, g2, b2, w3, bias3)
    slab = jax.block_until_ready(slab)

    out = model_3layer_forward(x, slab, dims)
    out = jax.block_until_ready(out)

    ref = reference_forward(x, w1, g1, b1, w2, g2, b2, w3, bias3)
    assert out.shape == (B, 4)
    assert jnp.allclose(out, ref, atol=1e-4, rtol=1e-4), "mismatch vs reference"

    # TODO(synk): BatchNorm running_mean/running_var buffer updates (training
    # side effects) are not reproduced; the forward output does not use them.
    print("KERNEL_OK")
</pallas_src>

<mosaic_0001>
module attributes {stable_mosaic.version = 11 : i64} {
  func.func @_mlp3_kernel(%arg0: memref<8x32xf32, #tpu.memory_space<vmem>>, %arg1: memref<296x128xf32, #tpu.memory_space<vmem>>, %arg2: memref<8x4xf32, #tpu.memory_space<vmem>>) attributes {dimension_semantics = [], scalar_prefetch = 0 : i64, scratch_operands = 0 : i64, tpu.core_type = #tpu.core_type<tc>} {
    %c0 = arith.constant 0 : index
    %c0_0 = arith.constant 0 : index
    %0 = vector.load %arg0[%c0, %c0_0] : memref<8x32xf32, #tpu.memory_space<vmem>>, vector<8x32xf32>
    %c0_1 = arith.constant 0 : index
    %c0_2 = arith.constant 0 : index
    %1 = vector.load %arg1[%c0_1, %c0_2] : memref<296x128xf32, #tpu.memory_space<vmem>>, vector<32x128xf32>
    %c32 = arith.constant 32 : index
    %c0_3 = arith.constant 0 : index
    %2 = vector.load %arg1[%c32, %c0_3] : memref<296x128xf32, #tpu.memory_space<vmem>>, vector<128x128xf32>
    %c160 = arith.constant 160 : index
    %c0_4 = arith.constant 0 : index
    %3 = vector.load %arg1[%c160, %c0_4] : memref<296x128xf32, #tpu.memory_space<vmem>>, vector<128x128xf32>
    %c288 = arith.constant 288 : index
    %c0_5 = arith.constant 0 : index
    %4 = vector.load %arg1[%c288, %c0_5] : memref<296x128xf32, #tpu.memory_space<vmem>>, vector<1x128xf32>
    %c289 = arith.constant 289 : index
    %c0_6 = arith.constant 0 : index
    %5 = vector.load %arg1[%c289, %c0_6] : memref<296x128xf32, #tpu.memory_space<vmem>>, vector<1x128xf32>
    %c290 = arith.constant 290 : index
    %c0_7 = arith.constant 0 : index
    %6 = vector.load %arg1[%c290, %c0_7] : memref<296x128xf32, #tpu.memory_space<vmem>>, vector<1x128xf32>
    %c291 = arith.constant 291 : index
    %c0_8 = arith.constant 0 : index
    %7 = vector.load %arg1[%c291, %c0_8] : memref<296x128xf32, #tpu.memory_space<vmem>>, vector<1x128xf32>
    %c292 = arith.constant 292 : index
    %c0_9 = arith.constant 0 : index
    %8 = vector.load %arg1[%c292, %c0_9] : memref<296x128xf32, #tpu.memory_space<vmem>>, vector<1x128xf32>
    %cst = arith.constant dense<0.000000e+00> : vector<8x128xf32>
    %9 = tpu.matmul %0, %1, %cst {dimension_numbers = #tpu.dot_dimension_numbers<[1], [0], [0], [1], [0, 0, 1, 1], [], []>} : vector<8x32xf32>, vector<32x128xf32>, vector<8x128xf32> -> vector<8x128xf32>
    %cst_10 = arith.constant dense<0.000000e+00> : vector<128xf32>
    %10 = vector.multi_reduction <add>, %9, %cst_10 [0] : vector<8x128xf32> to vector<128xf32>
    %11 = vector.shape_cast %10 : vector<128xf32> to vector<1x128xf32>
    %cst_11 = arith.constant 1.250000e-01 : f32
    %12 = vector.broadcast %cst_11 : f32 to vector<1x128xf32>
    %13 = arith.mulf %11, %12 : vector<1x128xf32>
    %14 = arith.mulf %9, %9 : vector<8x128xf32>
    %cst_12 = arith.constant dense<0.000000e+00> : vector<128xf32>
    %15 = vector.multi_reduction <add>, %14, %cst_12 [0] : vector<8x128xf32> to vector<128xf32>
    %16 = vector.shape_cast %15 : vector<128xf32> to vector<1x128xf32>
    %cst_13 = arith.constant 1.250000e-01 : f32
    %17 = vector.broadcast %cst_13 : f32 to vector<1x128xf32>
    %18 = arith.mulf %16, %17 : vector<1x128xf32>
    %19 = arith.mulf %13, %13 : vector<1x128xf32>
    %20 = arith.subf %18, %19 : vector<1x128xf32>
    %cst_14 = arith.constant 0.000000e+00 : f32
    %21 = vector.broadcast %cst_14 : f32 to vector<1x128xf32>
    %22 = arith.maximumf %20, %21 : vector<1x128xf32>
    %cst_15 = arith.constant 9.99999974E-6 : f32
    %23 = vector.broadcast %cst_15 : f32 to vector<1x128xf32>
    %24 = arith.addf %22, %23 : vector<1x128xf32>
    %25 = math.rsqrt %24 : vector<1x128xf32>
    %26 = arith.mulf %4, %25 : vector<1x128xf32>
    %27 = arith.mulf %13, %26 : vector<1x128xf32>
    %28 = arith.subf %5, %27 : vector<1x128xf32>
    %29 = vector.broadcast %26 : vector<1x128xf32> to vector<8x128xf32>
    %30 = arith.mulf %9, %29 : vector<8x128xf32>
    %31 = vector.broadcast %28 : vector<1x128xf32> to vector<8x128xf32>
    %32 = arith.addf %30, %31 : vector<8x128xf32>
    %cst_16 = arith.constant 0.000000e+00 : f32
    %33 = vector.broadcast %cst_16 : f32 to vector<8x128xf32>
    %34 = arith.maximumf %32, %33 : vector<8x128xf32>
    %cst_17 = arith.constant dense<0.000000e+00> : vector<8x128xf32>
    %35 = tpu.matmul %34, %2, %cst_17 {dimension_numbers = #tpu.dot_dimension_numbers<[1], [0], [0], [1], [0, 0, 1, 1], [], []>} : vector<8x128xf32>, vector<128x128xf32>, vector<8x128xf32> -> vector<8x128xf32>
    %cst_18 = arith.constant dense<0.000000e+00> : vector<128xf32>
    %36 = vector.multi_reduction <add>, %35, %cst_18 [0] : vector<8x128xf32> to vector<128xf32>
    %37 = vector.shape_cast %36 : vector<128xf32> to vector<1x128xf32>
    %cst_19 = arith.constant 1.250000e-01 : f32
    %38 = vector.broadcast %cst_19 : f32 to vector<1x128xf32>
    %39 = arith.mulf %37, %38 : vector<1x128xf32>
    %40 = arith.mulf %35, %35 : vector<8x128xf32>
    %cst_20 = arith.constant dense<0.000000e+00> : vector<128xf32>
    %41 = vector.multi_reduction <add>, %40, %cst_20 [0] : vector<8x128xf32> to vector<128xf32>
    %42 = vector.shape_cast %41 : vector<128xf32> to vector<1x128xf32>
    %cst_21 = arith.constant 1.250000e-01 : f32
    %43 = vector.broadcast %cst_21 : f32 to vector<1x128xf32>
    %44 = arith.mulf %42, %43 : vector<1x128xf32>
    %45 = arith.mulf %39, %39 : vector<1x128xf32>
    %46 = arith.subf %44, %45 : vector<1x128xf32>
    %cst_22 = arith.constant 0.000000e+00 : f32
    %47 = vector.broadcast %cst_22 : f32 to vector<1x128xf32>
    %48 = arith.maximumf %46, %47 : vector<1x128xf32>
    %cst_23 = arith.constant 9.99999974E-6 : f32
    %49 = vector.broadcast %cst_23 : f32 to vector<1x128xf32>
    %50 = arith.addf %48, %49 : vector<1x128xf32>
    %51 = math.rsqrt %50 : vector<1x128xf32>
    %52 = arith.mulf %6, %51 : vector<1x128xf32>
    %53 = arith.mulf %39, %52 : vector<1x128xf32>
    %54 = arith.subf %7, %53 : vector<1x128xf32>
    %55 = vector.broadcast %52 : vector<1x128xf32> to vector<8x128xf32>
    %56 = arith.mulf %35, %55 : vector<8x128xf32>
    %57 = vector.broadcast %54 : vector<1x128xf32> to vector<8x128xf32>
    %58 = arith.addf %56, %57 : vector<8x128xf32>
    %cst_24 = arith.constant 0.000000e+00 : f32
    %59 = vector.broadcast %cst_24 : f32 to vector<8x128xf32>
    %60 = arith.maximumf %58, %59 : vector<8x128xf32>
    %cst_25 = arith.constant dense<0.000000e+00> : vector<8x128xf32>
    %61 = tpu.matmul %60, %3, %cst_25 {dimension_numbers = #tpu.dot_dimension_numbers<[1], [0], [0], [1], [0, 0, 1, 1], [], []>} : vector<8x128xf32>, vector<128x128xf32>, vector<8x128xf32> -> vector<8x128xf32>
    %62 = vector.broadcast %8 : vector<1x128xf32> to vector<8x128xf32>
    %63 = arith.addf %61, %62 : vector<8x128xf32>
    %64 = math.tanh %63 : vector<8x128xf32>
    %65 = arith.mulf %64, %64 : vector<8x128xf32>
    %cst_26 = arith.constant dense<0.000000e+00> : vector<8xf32>
    %66 = vector.multi_reduction <add>, %65, %cst_26 [1] : vector<8x128xf32> to vector<8xf32>
    %67 = vector.shape_cast %66 : vector<8xf32> to vector<8x1xf32>
    %cst_27 = arith.constant 1.000000e-24 : f32
    %68 = vector.broadcast %cst_27 : f32 to vector<8x1xf32>
    %69 = arith.maximumf %67, %68 : vector<8x1xf32>
    %70 = math.rsqrt %69 : vector<8x1xf32>
    %71 = vector.broadcast %70 : vector<8x1xf32> to vector<8x128xf32>
    %72 = arith.mulf %64, %71 : vector<8x128xf32>
    %73 = vector.extract_strided_slice %72 {offsets = [0, 0], sizes = [8, 4], strides = [1, 1]} : vector<8x128xf32> to vector<8x4xf32>
    %c0_28 = arith.constant 0 : index
    %c0_29 = arith.constant 0 : index
    %74 = vector.load %arg2[%c0_28, %c0_29] : memref<8x4xf32, #tpu.memory_space<vmem>>, vector<8x4xf32>
    tpu.vector_store %arg2[%c0_28, %c0_29], %73 {strides = array<i32>} : memref<8x4xf32, #tpu.memory_space<vmem>>, vector<8x4xf32>,
    return
  }
}

</mosaic_0001>

<llo_original>
// kernel: model_3layer_forward.1
$region0: #{model_3layer_forward.1}
  #allocation0 [shape = 'u32[]', space=smem, size = 0x4, offset = 0x4, fixed_abs, tag = 'smem constant byte address 0x4 - core index']
  #allocation1 [shape = 'u32[144,128]{1,0:T(1,128)}', space=vmem, size = 0x12000, scoped, tag = 'internal scratch']
  %s0 = inlined_call_operand.hbm [shape: f32[8,32], index: 0, kind: input, shape index: {}]
  %s1 = inlined_call_operand.hbm [shape: f32[296,128], index: 1, kind: input, shape index: {}]
  %s2 = inlined_call_operand.vmem [shape: f32[8,4], index: 2, kind: output, shape index: {}]
  %s3 = sld [smem:[#allocation0]]
  $region26: #{model_3layer_forward.1} parent=0
    _
  %s5 = ssub.s32 1, %s3
  %s6 = scalar_select 0, %s5, %s3
  $region1: #{model_3layer_forward.1} parent=0
    #allocation2 [shape = 'u8[4096]{0}', space=vmem, size = 0x1000, scoped, tag = 'input window, operand 0, single buffered']
    #allocation3 [shape = 's32[1]{0}', space=sflag, size = 0x4, scoped, tag = 'scoped memory for model_3layer_forward.1']
    #allocation4 [shape = 'u8[151552]{0}', space=vmem, size = 0x25000, scoped, tag = 'input window, operand 1, single buffered']
    #allocation5 [shape = 's32[1]{0}', space=sflag, size = 0x4, scoped, tag = 'scoped memory for model_3layer_forward.1']
    %7 = vsyncpa [#allocation3], 0
    %8 = vsyncpa [#allocation5], 0
    // Predicated region
    $region2: #{model_3layer_forward.1} parent=1 // pred_check
      _
    $region3: #{model_3layer_forward.1} parent=1 // pred_check_branch
      %10 = sbr.rel (0) target = $region5
    $region4: #{model_3layer_forward.1} parent=1 // pred_region
      %s12 = ssub.s32 128, 128
      %13 = vsyncadd [#allocation3], %s12
      %s15 = sshll.u32 [#allocation2], 4
      %s16 = int_to_ptr.vmem [resolvable:$true] %s15
      %18 = dma.hbm_to_vmem [thread:$0]  %s0, 128, %s16, [#allocation3]
    $region5: #{model_3layer_forward.1} parent=1 // pred_fallthru
      _
    // Predicated region
    $region6: #{model_3layer_forward.1} parent=1 // pred_check
      _
    $region7: #{model_3layer_forward.1} parent=1 // pred_check_branch
      %20 = sbr.rel (0) target = $region9
    $region8: #{model_3layer_forward.1} parent=1 // pred_region
      %s22 = ssub.s32 4736, 4736
      %23 = vsyncadd [#allocation5], %s22
      %s24 = sshll.u32 [#allocation4], 4
      %s25 = int_to_ptr.vmem [resolvable:$true] %s24
      %30 = dma.hbm_to_vmem [thread:$0]  %s1, 4736, %s25, [#allocation5], 128, 128, 8
    $region9: #{model_3layer_forward.1} parent=1 // pred_fallthru
      _
    // Predicated region
    $region10: #{model_3layer_forward.1} parent=1 // pred_check
      _
    $region11: #{model_3layer_forward.1} parent=1 // pred_check_branch
      %32 = sbr.rel (0) target = $region13
    $region12: #{model_3layer_forward.1} parent=1 // pred_region
      %33 = dma.done [#allocation3], 128
    $region13: #{model_3layer_forward.1} parent=1 // pred_fallthru
      _
    // Predicated region
    $region14: #{model_3layer_forward.1} parent=1 // pred_check
      _
    $region15: #{model_3layer_forward.1} parent=1 // pred_check_branch
      %35 = sbr.rel (0) target = $region17
    $region16: #{model_3layer_forward.1} parent=1 // pred_region
      %36 = dma.done [#allocation5], 4736
    $region17: #{model_3layer_forward.1} parent=1 // pred_fallthru
      _
    %v37 = vld [vmem:[#allocation2] sm:$0xff]
    %v38 = vld [vmem:[#allocation4] sm:$0xff]
    %v39 = vld [vmem:[#allocation4 + $0x8] sm:$0xff]
    %v40 = vld [vmem:[#allocation4 + $0x10] sm:$0xff]
    %v41 = vld [vmem:[#allocation4 + $0x18] sm:$0xff]
    %v42 = vld [vmem:[#allocation4 + $0x20] sm:$0xff]
    %v43 = vld [vmem:[#allocation4 + $0x28] sm:$0xff]
    %v44 = vld [vmem:[#allocation4 + $0x30] sm:$0xff]
    %v45 = vld [vmem:[#allocation4 + $0x38] sm:$0xff]
    %v46 = vld [vmem:[#allocation4 + $0x40] sm:$0xff]
    %v47 = vld [vmem:[#allocation4 + $0x48] sm:$0xff]
    %v48 = vld [vmem:[#allocation4 + $0x50] sm:$0xff]
    %v49 = vld [vmem:[#allocation4 + $0x58] sm:$0xff]
    %v50 = vld [vmem:[#allocation4 + $0x60] sm:$0xff]
    %v51 = vld [vmem:[#allocation4 + $0x68] sm:$0xff]
    %v52 = vld [vmem:[#allocation4 + $0x70] sm:$0xff]
    %v53 = vld [vmem:[#allocation4 + $0x78] sm:$0xff]
    %v54 = vld [vmem:[#allocation4 + $0x80] sm:$0xff]
    %v55 = vld [vmem:[#allocation4 + $0x88] sm:$0xff]
    %v56 = vld [vmem:[#allocation4 + $0x90] sm:$0xff]
    %v57 = vld [vmem:[#allocation4 + $0x98] sm:$0xff]
    %v58 = vld [vmem:[#allocation4 + $0xa0] sm:$0xff]
    %v59 = vld [vmem:[#allocation4 + $0xa8] sm:$0xff]
    %v60 = vld [vmem:[#allocation4 + $0xb0] sm:$0xff]
    %v61 = vld [vmem:[#allocation4 + $0xb8] sm:$0xff]
    %v62 = vld [vmem:[#allocation4 + $0xc0] sm:$0xff]
    %v63 = vld [vmem:[#allocation4 + $0xc8] sm:$0xff]
    %v64 = vld [vmem:[#allocation4 + $0xd0] sm:$0xff]
    %v65 = vld [vmem:[#allocation4 + $0xd8] sm:$0xff]
    %v66 = vld [vmem:[#allocation4 + $0xe0] sm:$0xff]
    %v67 = vld [vmem:[#allocation4 + $0xe8] sm:$0xff]
    %v68 = vld [vmem:[#allocation4 + $0xf0] sm:$0xff]
    %v69 = vld [vmem:[#allocation4 + $0xf8] sm:$0xff]
    %v70 = vld [vmem:[#allocation4 + $0x100] sm:$0xff]
    %v71 = vld [vmem:[#allocation4 + $0x108] sm:$0xff]
    %v72 = vld [vmem:[#allocation4 + $0x110] sm:$0xff]
    %v73 = vld [vmem:[#allocation4 + $0x118] sm:$0xff]
    %v74 = vld [vmem:[#allocation4 + $0x120] sm:$0x1]
    %v75 = vld [vmem:[#allocation4 + $0x121] sm:$0x1]
    %v76 = vld [vmem:[#allocation4 + $0x122] sm:$0x1]
    %v77 = vld [vmem:[#allocation4 + $0x123] sm:$0x1]
    %v78 = vld [vmem:[#allocation4 + $0x124] sm:$0x1]
    %vm79 = vcmask 261120
    %v81 = vsel %vm79, %v37, 0
    %83 = vmatprep.subr.mxu0 0.0
    %84 = vmatpush1.msra.mxu0 0.0
    %85 = vmatprep.subr.mxu0 0.0
    %86 = vmatpush1.msra.mxu0 0.0
    %87 = vmatprep.subr.mxu0 0.0
    %88 = vmatpush1.msra.mxu0 0.0
    %89 = vmatprep.subr.mxu0 0.0
    %90 = vmatpush1.msra.mxu0 0.0
    %91 = vmatprep.subr.mxu0 0.0
    %92 = vmatpush1.msra.mxu0 0.0
    %93 = vmatprep.subr.mxu0 0.0
    %94 = vmatpush1.msra.mxu0 0.0
    %95 = vmatprep.subr.mxu0 0.0
    %96 = vmatpush1.msra.mxu0 0.0
    %97 = vmatprep.subr.mxu0 0.0
    %98 = vmatpush1.msra.mxu0 0.0
    %99 = vmatprep.subr.mxu0 0.0
    %100 = vmatpush1.msra.mxu0 0.0
    %101 = vmatprep.subr.mxu0 0.0
    %102 = vmatpush1.msra.mxu0 0.0
    %103 = vmatprep.subr.mxu0 0.0
    %104 = vmatpush1.msra.mxu0 0.0
    %105 = vmatprep.subr.mxu0 0.0
    %106 = vmatpush1.msra.mxu0 0.0
    %107 = vmatprep.subr.mxu0 0.0
    %108 = vmatpush1.msra.mxu0 %v41
    %109 = vmatprep.subr.mxu0 0.0
    %110 = vmatpush1.msra.mxu0 %v40
    %111 = vmatprep.subr.mxu0 0.0
    %112 = vmatpush1.msra.mxu0 %v39
    %113 = vmatprep.subr.mxu0 0.0
    %114 = vmatpush1.msra.mxu0 %v38
    %115 = vmatprep.subr.mxu0 0.0
    %116 = vmatpush2.msra.mxu0 0.0
    %117 = vmatprep.subr.mxu0 0.0
    %118 = vmatpush2.msra.mxu0 0.0
    %119 = vmatprep.subr.mxu0 0.0
    %120 = vmatpush2.msra.mxu0 0.0
    %121 = vmatprep.subr.mxu0 0.0
    %122 = vmatpush2.msra.mxu0 0.0
    %123 = vmatprep.subr.mxu0 0.0
    %124 = vmatpush2.msra.mxu0 0.0
    %125 = vmatprep.subr.mxu0 0.0
    %126 = vmatpush2.msra.mxu0 0.0
    %127 = vmatprep.subr.mxu0 0.0
    %128 = vmatpush2.msra.mxu0 0.0
    %129 = vmatprep.subr.mxu0 0.0
    %130 = vmatpush2.msra.mxu0 0.0
    %131 = vmatprep.subr.mxu0 0.0
    %132 = vmatpush2.msra.mxu0 0.0
    %133 = vmatprep.subr.mxu0 0.0
    %134 = vmatpush2.msra.mxu0 0.0
    %135 = vmatprep.subr.mxu0 0.0
    %136 = vmatpush2.msra.mxu0 0.0
    %137 = vmatprep.subr.mxu0 0.0
    %138 = vmatpush2.msra.mxu0 0.0
    %139 = vmatprep.subr.mxu0 0.0
    %140 = vmatpush2.msra.mxu0 0.0
    %141 = vmatprep.subr.mxu0 0.0
    %142 = vmatpush2.msra.mxu0 0.0
    %143 = vmatprep.subr.mxu0 0.0
    %144 = vmatpush2.msra.mxu0 0.0
    %145 = vmatprep.subr.mxu0 0.0
    %146 = vmatpush2.msra.mxu0 0.0
    %147 = vmatprep.mubr.f32.mxu0 0.0
    %148 = vmatmul.mubr.f32.gmra.mxu0 %v81
    %v149 = vpop.f32.mrf.mxu0
    %v150 = vadd.f32 0.0, %v149
    %v151 = vpop.f32.mrf.mxu0
    %152 = vdwg.mxu0
    %v153 = vrot.slane %v150, 4
    %v154 = vadd.f32 %v150, %v153
    %v155 = vrot.slane %v154, 2
    %v156 = vadd.f32 %v154, %v155
    %v157 = vrot.slane %v156, 1
    %v158 = vadd.f32 %v156, %v157
    %v159 = vmul.f32 %v158, 0.125
    %v160 = vmul.f32 %v150, %v150
    %v161 = vrot.slane %v160, 4
    %v162 = vadd.f32 %v160, %v161
    %v163 = vrot.slane %v162, 2
    %v164 = vadd.f32 %v162, %v163
    %v165 = vrot.slane %v164, 1
    %v166 = vadd.f32 %v164, %v165
    %v167 = vmul.f32 %v166, 0.125
    %v168 = vmul.f32 %v159, %v159
    %v169 = vsub.f32 %v167, %v168
    %v170 = vmax.f32 %v169, 0.0
    %v171 = vadd.f32 %v170, 1e-05
    %v172 = vrsqrt.pop %v171
    %v173 = vmul.f32 %v74, %v172
    %v174 = vmul.f32 %v159, %v173
    %v175 = vsub.f32 %v75, %v174
    %v176 = vlaneseq
    %v177 = vshrl.u32 %v176, 7
    %v178 = vsub.s32 0, %v177
    %v179 = vrot.slane %v173, %v178
    %v180 = vmul.f32 %v150, %v179
    %v181 = vlaneseq
    %v182 = vshrl.u32 %v181, 7
    %v183 = vsub.s32 0, %v182
    %v184 = vrot.slane %v175, %v183
    %v185 = vadd.f32 %v180, %v184
    %v186 = vmax.f32 %v185, 0.0
    %187 = vmatprep.subr.mxu0 0.0
    %188 = vmatpush1.msra.mxu0 %v57
    %189 = vmatprep.subr.mxu0 0.0
    %190 = vmatpush1.msra.mxu0 %v56
    %191 = vmatprep.subr.mxu0 0.0
    %192 = vmatpush1.msra.mxu0 %v55
    %193 = vmatprep.subr.mxu0 0.0
    %194 = vmatpush1.msra.mxu0 %v54
    %195 = vmatprep.subr.mxu0 0.0
    %196 = vmatpush1.msra.mxu0 %v53
    %197 = vmatprep.subr.mxu0 0.0
    %198 = vmatpush1.msra.mxu0 %v52
    %199 = vmatprep.subr.mxu0 0.0
    %200 = vmatpush1.msra.mxu0 %v51
    %201 = vmatprep.subr.mxu0 0.0
    %202 = vmatpush1.msra.mxu0 %v50
    %203 = vmatprep.subr.mxu0 0.0
    %204 = vmatpush1.msra.mxu0 %v49
    %205 = vmatprep.subr.mxu0 0.0
    %206 = vmatpush1.msra.mxu0 %v48
    %207 = vmatprep.subr.mxu0 0.0
    %208 = vmatpush1.msra.mxu0 %v47
    %209 = vmatprep.subr.mxu0 0.0
    %210 = vmatpush1.msra.mxu0 %v46
    %211 = vmatprep.subr.mxu0 0.0
    %212 = vmatpush1.msra.mxu0 %v45
    %213 = vmatprep.subr.mxu0 0.0
    %214 = vmatpush1.msra.mxu0 %v44
    %215 = vmatprep.subr.mxu0 0.0
    %216 = vmatpush1.msra.mxu0 %v43
    %217 = vmatprep.subr.mxu0 0.0
    %218 = vmatpush1.msra.mxu0 %v42
    %219 = vmatprep.subr.mxu0 0.0
    %220 = vmatpush2.msra.mxu0 0.0
    %221 = vmatprep.subr.mxu0 0.0
    %222 = vmatpush2.msra.mxu0 0.0
    %223 = vmatprep.subr.mxu0 0.0
    %224 = vmatpush2.msra.mxu0 0.0
    %225 = vmatprep.subr.mxu0 0.0
    %226 = vmatpush2.msra.mxu0 0.0
    %227 = vmatprep.subr.mxu0 0.0
    %228 = vmatpush2.msra.mxu0 0.0
    %229 = vmatprep.subr.mxu0 0.0
    %230 = vmatpush2.msra.mxu0 0.0
    %231 = vmatprep.subr.mxu0 0.0
    %232 = vmatpush2.msra.mxu0 0.0
    %233 = vmatprep.subr.mxu0 0.0
    %234 = vmatpush2.msra.mxu0 0.0
    %235 = vmatprep.subr.mxu0 0.0
    %236 = vmatpush2.msra.mxu0 0.0
    %237 = vmatprep.subr.mxu0 0.0
    %238 = vmatpush2.msra.mxu0 0.0
    %239 = vmatprep.subr.mxu0 0.0
    %240 = vmatpush2.msra.mxu0 0.0
    %241 = vmatprep.subr.mxu0 0.0
    %242 = vmatpush2.msra.mxu0 0.0
    %243 = vmatprep.subr.mxu0 0.0
    %244 = vmatpush2.msra.mxu0 0.0
    %245 = vmatprep.subr.mxu0 0.0
    %246 = vmatpush2.msra.mxu0 0.0
    %247 = vmatprep.subr.mxu0 0.0
    %248 = vmatpush2.msra.mxu0 0.0
    %249 = vmatprep.subr.mxu0 0.0
    %250 = vmatpush2.msra.mxu0 0.0
    %251 = vmatprep.mubr.f32.mxu0 0.0
    %252 = vmatmul.mubr.f32.gmra.mxu0 %v186
    %v253 = vpop.f32.mrf.mxu0
    %v254 = vadd.f32 0.0, %v253
    %v255 = vpop.f32.mrf.mxu0
    %256 = vdwg.mxu0
    %v257 = vrot.slane %v254, 4
    %v258 = vadd.f32 %v254, %v257
    %v259 = vrot.slane %v258, 2
    %v260 = vadd.f32 %v258, %v259
    %v261 = vrot.slane %v260, 1
    %v262 = vadd.f32 %v260, %v261
    %v263 = vmul.f32 %v262, 0.125
    %v264 = vmul.f32 %v254, %v254
    %v265 = vrot.slane %v264, 4
    %v266 = vadd.f32 %v264, %v265
    %v267 = vrot.slane %v266, 2
    %v268 = vadd.f32 %v266, %v267
    %v269 = vrot.slane %v268, 1
    %v270 = vadd.f32 %v268, %v269
    %v271 = vmul.f32 %v270, 0.125
    %v272 = vmul.f32 %v263, %v263
    %v273 = vsub.f32 %v271, %v272
    %v274 = vmax.f32 %v273, 0.0
    %v275 = vadd.f32 %v274, 1e-05
    %v276 = vrsqrt.pop %v275
    %v277 = vmul.f32 %v76, %v276
    %v278 = vmul.f32 %v263, %v277
    %v279 = vsub.f32 %v77, %v278
    %v280 = vlaneseq
    %v281 = vshrl.u32 %v280, 7
    %v282 = vsub.s32 0, %v281
    %v283 = vrot.slane %v277, %v282
    %v284 = vmul.f32 %v254, %v283
    %v285 = vlaneseq
    %v286 = vshrl.u32 %v285, 7
    %v287 = vsub.s32 0, %v286
    %v288 = vrot.slane %v279, %v287
    %v289 = vadd.f32 %v284, %v288
    %v290 = vmax.f32 %v289, 0.0
    %v291 = vlaneseq
    %v292 = vshrl.u32 %v291, 7
    %v293 = vsub.s32 0, %v292
    %v294 = vrot.slane %v78, %v293
    %295 = vmatprep.subr.mxu0 0.0
    %296 = vmatpush1.msra.mxu0 %v73
    %297 = vmatprep.subr.mxu0 0.0
    %298 = vmatpush1.msra.mxu0 %v72
    %299 = vmatprep.subr.mxu0 0.0
    %300 = vmatpush1.msra.mxu0 %v71
    %301 = vmatprep.subr.mxu0 0.0
    %302 = vmatpush1.msra.mxu0 %v70
    %303 = vmatprep.subr.mxu0 0.0
    %304 = vmatpush1.msra.mxu0 %v69
    %305 = vmatprep.subr.mxu0 0.0
    %306 = vmatpush1.msra.mxu0 %v68
    %307 = vmatprep.subr.mxu0 0.0
    %308 = vmatpush1.msra.mxu0 %v67
    %309 = vmatprep.subr.mxu0 0.0
    %310 = vmatpush1.msra.mxu0 %v66
    %311 = vmatprep.subr.mxu0 0.0
    %312 = vmatpush1.msra.mxu0 %v65
    %313 = vmatprep.subr.mxu0 0.0
    %314 = vmatpush1.msra.mxu0 %v64
    %315 = vmatprep.subr.mxu0 0.0
    %316 = vmatpush1.msra.mxu0 %v63
    %317 = vmatprep.subr.mxu0 0.0
    %318 = vmatpush1.msra.mxu0 %v62
    %319 = vmatprep.subr.mxu0 0.0
    %320 = vmatpush1.msra.mxu0 %v61
    %321 = vmatprep.subr.mxu0 0.0
    %322 = vmatpush1.msra.mxu0 %v60
    %323 = vmatprep.subr.mxu0 0.0
    %324 = vmatpush1.msra.mxu0 %v59
    %325 = vmatprep.subr.mxu0 0.0
    %326 = vmatpush1.msra.mxu0 %v58
    %327 = vmatprep.subr.mxu0 0.0
    %328 = vmatpush2.msra.mxu0 0.0
    %329 = vmatprep.subr.mxu0 0.0
    %330 = vmatpush2.msra.mxu0 0.0
    %331 = vmatprep.subr.mxu0 0.0
    %332 = vmatpush2.msra.mxu0 0.0
    %333 = vmatprep.subr.mxu0 0.0
    %334 = vmatpush2.msra.mxu0 0.0
    %335 = vmatprep.subr.mxu0 0.0
    %336 = vmatpush2.msra.mxu0 0.0
    %337 = vmatprep.subr.mxu0 0.0
    %338 = vmatpush2.msra.mxu0 0.0
    %339 = vmatprep.subr.mxu0 0.0
    %340 = vmatpush2.msra.mxu0 0.0
    %341 = vmatprep.subr.mxu0 0.0
    %342 = vmatpush2.msra.mxu0 0.0
    %343 = vmatprep.subr.mxu0 0.0
    %344 = vmatpush2.msra.mxu0 0.0
    %345 = vmatprep.subr.mxu0 0.0
    %346 = vmatpush2.msra.mxu0 0.0
    %347 = vmatprep.subr.mxu0 0.0
    %348 = vmatpush2.msra.mxu0 0.0
    %349 = vmatprep.subr.mxu0 0.0
    %350 = vmatpush2.msra.mxu0 0.0
    %351 = vmatprep.subr.mxu0 0.0
    %352 = vmatpush2.msra.mxu0 0.0
    %353 = vmatprep.subr.mxu0 0.0
    %354 = vmatpush2.msra.mxu0 0.0
    %355 = vmatprep.subr.mxu0 0.0
    %356 = vmatpush2.msra.mxu0 0.0
    %357 = vmatprep.subr.mxu0 0.0
    %358 = vmatpush2.msra.mxu0 0.0
    %359 = vmatprep.mubr.f32.mxu0 0.0
    %360 = vmatmul.mubr.f32.gmra.mxu0 %v290
    %v361 = vpop.f32.mrf.mxu0
    %v362 = vadd.f32 %v294, %v361
    %v363 = vpop.f32.mrf.mxu0
    %364 = vdwg.mxu0
    %v365 = vtanh.pop %v362
    %v366 = vmul.f32 %v365, %v365
    %367 = vadd.xlane.f32.xlu0 %v366
    %v368 = vpop.xlane.xlu0 %367
    %v369 = vmax.f32 %v368, 1e-24
    %v370 = vrsqrt.pop %v369
    %v371 = vmul.f32 %v365, %v370
    %vm372 = vcmask 31744
    %373 = vst.msk [vmem:[%s2] sm:$0xff] %vm372, %v371
    // Predicated region
    $region18: #{model_3layer_forward.1} parent=1 // pred_check
      _
    $region19: #{model_3layer_forward.1} parent=1 // pred_check_branch
      %375 = sbr.rel (0) target = $region21
    $region20: #{model_3layer_forward.1} parent=1 // pred_region
      _
    $region21: #{model_3layer_forward.1} parent=1 // pred_fallthru
      _
    // Predicated region
    $region22: #{model_3layer_forward.1} parent=1 // pred_check
      _
    $region23: #{model_3layer_forward.1} parent=1 // pred_check_branch
      %377 = sbr.rel (0) target = $region25
    $region24: #{model_3layer_forward.1} parent=1 // pred_region
      _
    $region25: #{model_3layer_forward.1} parent=1 // pred_fallthru
      _
    %378 = vsyncpa [#allocation3], 1
    %379 = vsyncpa [#allocation5], 1

</llo_original>
